<compile_context>
chip_gen: v7x
topology: tpu7x:2x2x1
jax: 0.10.0
libtpu: 0.0.40
codegen_flags: <defaults>
</compile_context>

<pallas_src>
import jax
import jax.numpy as jnp
from jax.experimental import pallas as pl
from jax.experimental.pallas import tpu as pltpu


def _ps_kernel(xr_ref, xi_ref, fr_ref, fi_ref, or_ref, oi_ref):
    # f = atten * exp(i*phi), precomputed in the wrapper; shape (1, tn),
    # broadcast over the batch rows of this tile.
    fr = fr_ref[...]            # (1, tn)
    fi = fi_ref[...]            # (1, tn)
    xr = xr_ref[...]            # (tb, tn)
    xi = xi_ref[...]            # (tb, tn)
    # out = x * f (complex multiply on split planes)
    or_ref[...] = xr * fr - xi * fi
    oi_ref[...] = xr * fi + xi * fr


def _choose_tiles(B, N):
    """Pick (tb, tn) so each (tb, tn) f32 block is ~2 MiB.

    4 streams (x_re, x_im, out_re, out_im) double-buffered at 2 MiB each is
    ~16 MiB of VMEM, under the explicit 32 MiB limit on every generation.
    """
    target = 2 * 1024 * 1024  # bytes per block per stream

    # Feature-axis tiling only when N is wide AND 128-divisible (so the
    # lane dim of the block satisfies the (8,128) constraint without padding).
    if N % 128 == 0 and 8 * N * 4 > target:
        tn = (target // (8 * 4)) // 128 * 128
        tn = max(128, min(tn, N))
    else:
        tn = N  # full feature extent (always legal as a block dim)
        # TODO(synk): extremely wide, non-128-divisible N would need padding
        # or a BoundedSlice column tile; not needed at these shapes.

    bytes_per_row = tn * 4
    tb = max(1, target // bytes_per_row)
    tb = min(tb, B)

    # v7x: keep >= 2 batch tiles so both TensorCores get work.
    if B >= 16:
        half = ((-(-B // 2)) + 7) // 8 * 8
        tb = min(tb, half)

    # Sublane alignment: multiple of 8, or the full batch if B < 8.
    if B >= 8:
        tb = max(8, (tb // 8) * 8)
    else:
        tb = B
    return tb, tn


@jax.jit
def forward_ps(x_re, x_im, params, atten_re, atten_im):
    """Pallas implementation of ModulePS.forward.

    x_re, x_im          : (B, N) float32  -- real/imag planes of the complex input
    params              : (1, N) float32  -- learnable phases
    atten_re, atten_im  : (1, N) float32  -- real/imag planes of the atten buffer
    returns (out_re, out_im), each (B, N) float32
    """
    B, N = x_re.shape
    f32 = jnp.float32

    x_re = x_re.astype(f32)
    x_im = x_im.astype(f32)

    # O(N) precompute of the phase factor f = atten * exp(i*phi).
    phi = params.astype(f32).reshape(1, N)
    ar = atten_re.astype(f32).reshape(1, N)
    ai = atten_im.astype(f32).reshape(1, N)
    c = jnp.cos(phi)
    s = jnp.sin(phi)
    fr = ar * c - ai * s
    fi = ar * s + ai * c

    tb, tn = _choose_tiles(B, N)
    grid = (pl.cdiv(B, tb), pl.cdiv(N, tn))

    x_spec = pl.BlockSpec((tb, tn), lambda i, j: (i, j))
    f_spec = pl.BlockSpec((1, tn), lambda i, j: (0, j))   # resident along batch axis
    o_spec = pl.BlockSpec((tb, tn), lambda i, j: (i, j))

    cost = pl.CostEstimate(
        flops=6 * B * N,
        transcendentals=0,
        bytes_accessed=4 * (4 * B * N + 2 * N),
    )

    out_re, out_im = pl.pallas_call(
        _ps_kernel,
        grid=grid,
        in_specs=[x_spec, x_spec, f_spec, f_spec],
        out_specs=[o_spec, o_spec],
        out_shape=(
            jax.ShapeDtypeStruct((B, N), f32),
            jax.ShapeDtypeStruct((B, N), f32),
        ),
        compiler_params=pltpu.CompilerParams(
            dimension_semantics=("parallel", "parallel"),
            vmem_limit_bytes=32 << 20,
        ),
        cost_estimate=cost,
    )(x_re, x_im, fr, fi)

    return out_re, out_im


if __name__ == "__main__":
    # Small, tile-friendly shapes: batch=8, nFeatures=128.
    B, N = 8, 128
    eps_radius, eps_angle = 0.05, 0.1

    key = jax.random.PRNGKey(0)
    k_xr, k_xi, k_p, k_rad, k_phi = jax.random.split(key, 5)

    # complex input, represented as real/imag float32 planes
    x_re = jax.random.normal(k_xr, (B, N), dtype=jnp.float32)
    x_im = jax.random.normal(k_xi, (B, N), dtype=jnp.float32)

    # Parameter (module init is zeros; use small deterministic values to
    # exercise the phase path — shape matches nn.Parameter(torch.zeros(1, N)))
    params = 0.1 * jax.random.normal(k_p, (1, N), dtype=jnp.float32)

    # atten buffer: radius * exp(1j * phi), deterministic
    radius = 1.0 - eps_radius * jax.random.uniform(k_rad, (N,), dtype=jnp.float32)
    a_phi = eps_angle * (2.0 * jax.random.uniform(k_phi, (N,), dtype=jnp.float32) - 1.0)
    atten_re = (radius * jnp.cos(a_phi)).reshape(1, N)
    atten_im = (radius * jnp.sin(a_phi)).reshape(1, N)

    out_re, out_im = forward_ps(x_re, x_im, params, atten_re, atten_im)
    jax.block_until_ready((out_re, out_im))

    # Reference (plain JAX, complex arithmetic) for correctness check.
    x_c = x_re + 1j * x_im
    atten_c = (atten_re + 1j * atten_im).astype(jnp.complex64)
    ref = x_c * atten_c * jnp.exp(1j * params.astype(jnp.complex64))
    assert jnp.allclose(out_re, jnp.real(ref), atol=1e-5, rtol=1e-5)
    assert jnp.allclose(out_im, jnp.imag(ref), atol=1e-5, rtol=1e-5)

    print("KERNEL_OK")
</pallas_src>

<mosaic_0001>
module attributes {stable_mosaic.version = 11 : i64} {
  func.func @_ps_kernel(%arg0: i32, %arg1: i32, %arg2: memref<8x128xf32, #tpu.memory_space<vmem>>, %arg3: memref<8x128xf32, #tpu.memory_space<vmem>>, %arg4: memref<1x128xf32, #tpu.memory_space<vmem>>, %arg5: memref<1x128xf32, #tpu.memory_space<vmem>>, %arg6: memref<8x128xf32, #tpu.memory_space<vmem>>, %arg7: memref<8x128xf32, #tpu.memory_space<vmem>>) attributes {dimension_semantics = [#tpu.dimension_semantics<parallel>, #tpu.dimension_semantics<parallel>], iteration_bounds = array<i64: 1, 1>, scalar_prefetch = 0 : i64, scratch_operands = 0 : i64, tpu.core_type = #tpu.core_type<tc>, window_params = [{transform_indices = @transform_0, window_bounds = array<i64: 8, 128>}, {transform_indices = @transform_1, window_bounds = array<i64: 8, 128>}, {transform_indices = @transform_2, window_bounds = array<i64: 1, 128>}, {transform_indices = @transform_3, window_bounds = array<i64: 1, 128>}, {transform_indices = @transform_4, window_bounds = array<i64: 8, 128>}, {transform_indices = @transform_5, window_bounds = array<i64: 8, 128>}]} {
    %c0 = arith.constant 0 : index
    %c0_0 = arith.constant 0 : index
    %0 = vector.load %arg4[%c0, %c0_0] : memref<1x128xf32, #tpu.memory_space<vmem>>, vector<1x128xf32>
    %c0_1 = arith.constant 0 : index
    %c0_2 = arith.constant 0 : index
    %1 = vector.load %arg5[%c0_1, %c0_2] : memref<1x128xf32, #tpu.memory_space<vmem>>, vector<1x128xf32>
    %c0_3 = arith.constant 0 : index
    %c0_4 = arith.constant 0 : index
    %2 = vector.load %arg2[%c0_3, %c0_4] : memref<8x128xf32, #tpu.memory_space<vmem>>, vector<8x128xf32>
    %c0_5 = arith.constant 0 : index
    %c0_6 = arith.constant 0 : index
    %3 = vector.load %arg3[%c0_5, %c0_6] : memref<8x128xf32, #tpu.memory_space<vmem>>, vector<8x128xf32>
    %4 = vector.broadcast %0 : vector<1x128xf32> to vector<8x128xf32>
    %5 = arith.mulf %2, %4 : vector<8x128xf32>
    %6 = vector.broadcast %1 : vector<1x128xf32> to vector<8x128xf32>
    %7 = arith.mulf %3, %6 : vector<8x128xf32>
    %8 = arith.subf %5, %7 : vector<8x128xf32>
    %c0_7 = arith.constant 0 : index
    %c0_8 = arith.constant 0 : index
    %9 = vector.load %arg6[%c0_7, %c0_8] : memref<8x128xf32, #tpu.memory_space<vmem>>, vector<8x128xf32>
    tpu.vector_store %arg6[%c0_7, %c0_8], %8 {strides = array<i32>} : memref<8x128xf32, #tpu.memory_space<vmem>>, vector<8x128xf32>,
    %10 = vector.broadcast %1 : vector<1x128xf32> to vector<8x128xf32>
    %11 = arith.mulf %2, %10 : vector<8x128xf32>
    %12 = vector.broadcast %0 : vector<1x128xf32> to vector<8x128xf32>
    %13 = arith.mulf %3, %12 : vector<8x128xf32>
    %14 = arith.addf %11, %13 : vector<8x128xf32>
    %c0_9 = arith.constant 0 : index
    %c0_10 = arith.constant 0 : index
    %15 = vector.load %arg7[%c0_9, %c0_10] : memref<8x128xf32, #tpu.memory_space<vmem>>, vector<8x128xf32>
    tpu.vector_store %arg7[%c0_9, %c0_10], %14 {strides = array<i32>} : memref<8x128xf32, #tpu.memory_space<vmem>>, vector<8x128xf32>,
    return
  }
  func.func @transform_0(%arg0: i32, %arg1: i32) -> (i32, i32) {
    %c0_i32 = arith.constant 0 : i32
    return %arg0, %arg1 : i32, i32
  }
  func.func @transform_1(%arg0: i32, %arg1: i32) -> (i32, i32) {
    %c0_i32 = arith.constant 0 : i32
    return %arg0, %arg1 : i32, i32
  }
  func.func @transform_2(%arg0: i32, %arg1: i32) -> (i32, i32) {
    %c0_i32 = arith.constant 0 : i32
    %c0_i32_0 = arith.constant 0 : i32
    return %c0_i32, %arg1 : i32, i32
  }
  func.func @transform_3(%arg0: i32, %arg1: i32) -> (i32, i32) {
    %c0_i32 = arith.constant 0 : i32
    %c0_i32_0 = arith.constant 0 : i32
    return %c0_i32, %arg1 : i32, i32
  }
  func.func @transform_4(%arg0: i32, %arg1: i32) -> (i32, i32) {
    %c0_i32 = arith.constant 0 : i32
    return %arg0, %arg1 : i32, i32
  }
  func.func @transform_5(%arg0: i32, %arg1: i32) -> (i32, i32) {
    %c0_i32 = arith.constant 0 : i32
    return %arg0, %arg1 : i32, i32
  }
}

</mosaic_0001>

<llo_original>
// kernel: forward_ps.1
$region0: #{forward_ps.1}
  #allocation0 [shape = 'u32[]', space=smem, size = 0x4, offset = 0x4, fixed_abs, tag = 'smem constant byte address 0x4 - core index']
  #allocation1 [shape = 'u32[144,128]{1,0:T(1,128)}', space=vmem, size = 0x12000, scoped, tag = 'internal scratch']
  %s0 = inlined_call_operand.vmem [shape: f32[8,128], index: 0, kind: input, shape index: {}]
  %s1 = inlined_call_operand.vmem [shape: f32[8,128], index: 1, kind: input, shape index: {}]
  %s2 = inlined_call_operand.vmem [shape: f32[1,128], index: 2, kind: input, shape index: {}]
  %s3 = inlined_call_operand.vmem [shape: f32[1,128], index: 3, kind: input, shape index: {}]
  %s4 = inlined_call_operand.hbm [shape: f32[8,128], index: 4, kind: output, shape index: {0}]
  %s5 = inlined_call_operand.hbm [shape: f32[8,128], index: 5, kind: output, shape index: {1}]
  %6 = xla_tuple %s4, %s5
  %s7 = sld [smem:[#allocation0]]
  $region34: #{forward_ps.1} parent=0
    _
  %s9 = ssub.s32 1, %s7
  %s10 = scalar_select 0, %s9, %s7
  $region1: #{forward_ps.1} parent=0
    #allocation2 [shape = 'u8[4096]{0}', space=vmem, size = 0x1000, scoped, tag = 'output window, operand 0, single buffered']
    #allocation3 [shape = 's32[1]{0}', space=sflag, size = 0x4, scoped, tag = 'scoped memory for forward_ps.1']
    #allocation4 [shape = 'u8[4096]{0}', space=vmem, size = 0x1000, scoped, tag = 'output window, operand 1, single buffered']
    #allocation5 [shape = 's32[1]{0}', space=sflag, size = 0x4, scoped, tag = 'scoped memory for forward_ps.1']
    %11 = vsyncpa [#allocation3], 0
    %12 = vsyncpa [#allocation5], 0
    // Predicated region
    $region2: #{forward_ps.1} parent=1 // pred_check
      _
    $region3: #{forward_ps.1} parent=1 // pred_check_branch
      %14 = sbr.rel (0) target = $region5
    $region4: #{forward_ps.1} parent=1 // pred_region
      _
    $region5: #{forward_ps.1} parent=1 // pred_fallthru
      _
    // Predicated region
    $region6: #{forward_ps.1} parent=1 // pred_check
      _
    $region7: #{forward_ps.1} parent=1 // pred_check_branch
      %16 = sbr.rel (0) target = $region9
    $region8: #{forward_ps.1} parent=1 // pred_region
      _
    $region9: #{forward_ps.1} parent=1 // pred_fallthru
      _
    // Predicated region
    $region10: #{forward_ps.1} parent=1 // pred_check
      _
    $region11: #{forward_ps.1} parent=1 // pred_check_branch
      %18 = sbr.rel (0) target = $region13
    $region12: #{forward_ps.1} parent=1 // pred_region
      _
    $region13: #{forward_ps.1} parent=1 // pred_fallthru
      _
    // Predicated region
    $region14: #{forward_ps.1} parent=1 // pred_check
      _
    $region15: #{forward_ps.1} parent=1 // pred_check_branch
      %20 = sbr.rel (0) target = $region17
    $region16: #{forward_ps.1} parent=1 // pred_region
      _
    $region17: #{forward_ps.1} parent=1 // pred_fallthru
      _
    %v21 = vld [vmem:[%s2] sm:$0x1]
    %v22 = vld [vmem:[%s3] sm:$0x1]
    %v23 = vld [vmem:[%s0] sm:$0xff]
    %v24 = vld [vmem:[%s1] sm:$0xff]
    %v26 = vlaneseq
    %v27 = vshrl.u32 %v26, 7
    %v28 = vsub.s32 0, %v27
    %v29 = vrot.slane %v21, %v28
    %v31 = vmul.f32 %v23, %v29
    %v33 = vlaneseq
    %v34 = vshrl.u32 %v33, 7
    %v35 = vsub.s32 0, %v34
    %v36 = vrot.slane %v22, %v35
    %v38 = vmul.f32 %v24, %v36
    %v39 = vsub.f32 %v31, %v38
    %40 = vst [vmem:[#allocation2] sm:$0xff] %v39
    %v41 = vmul.f32 %v23, %v36
    %v42 = vmul.f32 %v24, %v29
    %v43 = vadd.f32 %v41, %v42
    %44 = vst [vmem:[#allocation4] sm:$0xff] %v43
    // Predicated region
    $region18: #{forward_ps.1} parent=1 // pred_check
      _
    $region19: #{forward_ps.1} parent=1 // pred_check_branch
      %46 = sbr.rel (0) target = $region21
    $region20: #{forward_ps.1} parent=1 // pred_region
      %s48 = ssub.s32 128, 128
      %49 = vsyncadd [#allocation3], %s48
      %s51 = sshll.u32 [#allocation2], 4
      %s52 = int_to_ptr.vmem [resolvable:$true] %s51
      %54 = dma.vmem_to_hbm [thread:$0]  %s52, 128, %s4, [#allocation3]
    $region21: #{forward_ps.1} parent=1 // pred_fallthru
      _
    // Predicated region
    $region22: #{forward_ps.1} parent=1 // pred_check
      _
    $region23: #{forward_ps.1} parent=1 // pred_check_branch
      %56 = sbr.rel (0) target = $region25
    $region24: #{forward_ps.1} parent=1 // pred_region
      %s58 = ssub.s32 128, 128
      %59 = vsyncadd [#allocation5], %s58
      %s61 = sshll.u32 [#allocation4], 4
      %s62 = int_to_ptr.vmem [resolvable:$true] %s61
      %64 = dma.vmem_to_hbm [thread:$0]  %s62, 128, %s5, [#allocation5]
    $region25: #{forward_ps.1} parent=1 // pred_fallthru
      _
    // Predicated region
    $region26: #{forward_ps.1} parent=1 // pred_check
      _
    $region27: #{forward_ps.1} parent=1 // pred_check_branch
      %66 = sbr.rel (0) target = $region29
    $region28: #{forward_ps.1} parent=1 // pred_region
      %67 = dma.done [#allocation3], 128
    $region29: #{forward_ps.1} parent=1 // pred_fallthru
      _
    // Predicated region
    $region30: #{forward_ps.1} parent=1 // pred_check
      _
    $region31: #{forward_ps.1} parent=1 // pred_check_branch
      %69 = sbr.rel (0) target = $region33
    $region32: #{forward_ps.1} parent=1 // pred_region
      %70 = dma.done [#allocation5], 128
    $region33: #{forward_ps.1} parent=1 // pred_fallthru
      _
    %71 = vsyncpa [#allocation3], 1
    %72 = vsyncpa [#allocation5], 1

</llo_original>
